<compile_context>
chip_gen: v7x
topology: tpu7x:2x2x1
jax: 0.10.0
libtpu: 0.0.40
codegen_flags: <defaults>
</compile_context>

<pallas_src>
import math
from functools import partial

import jax
import jax.numpy as jnp
from jax.experimental import pallas as pl
from jax.experimental.pallas import tpu as pltpu

LN_EPS = 1e-5
VMEM_LIMIT = 32 * 1024 * 1024          # fits scoped VMEM on v5e/v6e/v7x


# ----------------------------------------------------------------------------
# Tiling helpers
# ----------------------------------------------------------------------------

def _tile(dim, pref, granules=(256, 128, 8)):
    """Largest block <= pref that divides `dim`, preferring the listed granules;
    falls back to the full dim (always a legal block size)."""
    if dim <= pref:
        return dim
    for g in granules:
        t = (pref // g) * g
        while t >= g:
            if dim % t == 0:
                return t
            t -= g
    return dim


def _tile_m(M, pref=256):
    """Row (sublane) tile: prefer 16-multiples (bf16 sublane packing) and make sure
    there are >=2 blocks along the parallel M axis (2 TensorCores on v7x)."""
    t = _tile(M, pref, (16, 8))
    if M // t < 2:
        for cand in range(t // 2, 7, -1):
            if M % cand == 0 and cand % 8 == 0:
                return cand
    return t


# ----------------------------------------------------------------------------
# Pallas kernels
# ----------------------------------------------------------------------------

def linear_kernel(x_ref, w_ref, b_ref, o_ref):
    """o = x @ w + b with the full contraction dim in one block.  Grid (Mt, Nt)."""
    o_ref[...] = (jnp.dot(x_ref[...], w_ref[...],
                          preferred_element_type=jnp.float32)
                  + b_ref[...]).astype(o_ref.dtype)


def linear_acc_kernel(x_ref, w_ref, b_ref, o_ref, acc_ref):
    """Large-K fallback: tiled reduction with an f32 accumulator.  Grid (Mt, Nt, Kt)."""
    @pl.when(pl.program_id(2) == 0)
    def _():
        acc_ref[...] = jnp.zeros_like(acc_ref)

    acc_ref[...] += jnp.dot(x_ref[...], w_ref[...],
                            preferred_element_type=jnp.float32)

    @pl.when(pl.program_id(2) == pl.num_programs(2) - 1)
    def _():
        o_ref[...] = (acc_ref[...] + b_ref[...]).astype(o_ref.dtype)


def linear_res_ln_kernel(x_ref, w_ref, b_ref, r_ref, g_ref, bb_ref,
                         o32_ref, o16_ref, *, eps):
    """o = LayerNorm(x @ w + b + residual); emits f32 (residual stream) and bf16
    (next GEMM input) copies.  Grid (Mt,); full E contraction per block."""
    h = (jnp.dot(x_ref[...], w_ref[...], preferred_element_type=jnp.float32)
         + b_ref[...] + r_ref[...])
    mu = jnp.mean(h, axis=-1, keepdims=True)
    var = jnp.mean(jnp.square(h - mu), axis=-1, keepdims=True)
    y = (h - mu) * jax.lax.rsqrt(var + eps) * g_ref[...] + bb_ref[...]
    o32_ref[...] = y
    o16_ref[...] = y.astype(jnp.bfloat16)


def ffn_res_ln_kernel(x_ref, w1_ref, b1_ref, w2_ref, b2_ref, r_ref, g_ref, bb_ref,
                      o32_ref, o16_ref, acc_ref, *, eps):
    """o = LayerNorm(relu(x @ W1 + b1) @ W2 + b2 + residual).
    Grid (Mt, Ft); ff_dim is the reduction axis of the second matmul."""
    f = pl.program_id(1)

    @pl.when(f == 0)
    def _():
        acc_ref[...] = jnp.zeros_like(acc_ref)

    h = jnp.dot(x_ref[...], w1_ref[...],
                preferred_element_type=jnp.float32) + b1_ref[...]
    h = jnp.maximum(h, 0.0)                         # ff_activate_fn = 'relu'
    acc_ref[...] += jnp.dot(h.astype(jnp.bfloat16), w2_ref[...],
                            preferred_element_type=jnp.float32)

    @pl.when(f == pl.num_programs(1) - 1)
    def _():
        y = acc_ref[...] + b2_ref[...] + r_ref[...]
        mu = jnp.mean(y, axis=-1, keepdims=True)
        var = jnp.mean(jnp.square(y - mu), axis=-1, keepdims=True)
        yn = (y - mu) * jax.lax.rsqrt(var + eps) * g_ref[...] + bb_ref[...]
        o32_ref[...] = yn
        o16_ref[...] = yn.astype(jnp.bfloat16)


def flash_attn_kernel(q_ref, kv_ref, m_ref, o_ref, m_sc, l_sc, acc_sc,
                      *, H, Dh, scale):
    """Flash-style attention reading per-head Q/K/V column slices directly from the
    (1, t, 3E) QKV rows; writes lane-dense (tq, E) ctx rows.  Grid (B, Qt, Kt)."""
    ki = pl.program_id(2)
    E = H * Dh

    @pl.when(ki == 0)
    def _():
        m_sc[...] = jnp.full_like(m_sc, -jnp.inf)
        l_sc[...] = jnp.zeros_like(l_sc)
        acc_sc[...] = jnp.zeros_like(acc_sc)

    qrows = q_ref[0]                                # (tq, 3E) bf16
    krows = kv_ref[0]                               # (tk, 3E) bf16
    mask = m_ref[0]                                 # (1, tk) f32 additive

    for h in range(H):                              # static unrolled head loop
        q = qrows[:, h * Dh:(h + 1) * Dh]
        k = krows[:, E + h * Dh:E + (h + 1) * Dh]
        v = krows[:, 2 * E + h * Dh:2 * E + (h + 1) * Dh]
        s = jnp.dot(q, k.T, preferred_element_type=jnp.float32) * scale + mask
        m_prev = m_sc[h]
        m_new = jnp.maximum(m_prev, jnp.max(s, axis=-1, keepdims=True))
        alpha = jnp.exp(m_prev - m_new)
        p = jnp.exp(s - m_new)
        l_sc[h] = alpha * l_sc[h] + jnp.sum(p, axis=-1, keepdims=True)
        acc_sc[h] = alpha * acc_sc[h] + jnp.dot(
            p.astype(jnp.bfloat16), v, preferred_element_type=jnp.float32)
        m_sc[h] = m_new

    @pl.when(ki == pl.num_programs(2) - 1)
    def _():
        inv = pl.reciprocal(l_sc[...], approx=True)         # (H, tq, 1)
        parts = [acc_sc[h] * inv[h] for h in range(H)]
        o_ref[0] = jnp.concatenate(parts, axis=-1).astype(o_ref.dtype)


def attn_probs_kernel(q_ref, kv_ref, m_ref, o_ref, p_ref, *, H, Dh, scale):
    """Attention that also materializes the probability matrices (only when
    output_attention=True).  Grid (B, Qt); full KV per tile."""
    E = H * Dh
    qrows = q_ref[0]                                # (tq, 3E)
    krows = kv_ref[0]                               # (S, 3E)
    mask = m_ref[0]                                 # (1, S)
    parts = []
    for h in range(H):
        q = qrows[:, h * Dh:(h + 1) * Dh]
        k = krows[:, E + h * Dh:E + (h + 1) * Dh]
        v = krows[:, 2 * E + h * Dh:2 * E + (h + 1) * Dh]
        s = jnp.dot(q, k.T, preferred_element_type=jnp.float32) * scale + mask
        s = s - jnp.max(s, axis=-1, keepdims=True)
        p = jnp.exp(s)
        p = p / jnp.sum(p, axis=-1, keepdims=True)          # exact (diagnostic path)
        p_ref[0, h] = p.astype(p_ref.dtype)
        parts.append(jnp.dot(p.astype(jnp.bfloat16), v,
                             preferred_element_type=jnp.float32))
    o_ref[0] = jnp.concatenate(parts, axis=-1).astype(o_ref.dtype)


# ----------------------------------------------------------------------------
# Pallas wrappers (bf16 MXU inputs / f32 accumulation; weights already bf16)
# ----------------------------------------------------------------------------

def pallas_linear(x, w, b, out_dtype=jnp.float32):
    M, K = x.shape
    N = w.shape[1]
    b = b.reshape(1, N)
    tm = _tile_m(M)
    tn = _tile(N, 1024, (256, 128))

    if K <= 2048:       # full-K contraction in one block (the common BERT case)
        grid = (M // tm, N // tn)
        return pl.pallas_call(
            linear_kernel,
            out_shape=jax.ShapeDtypeStruct((M, N), out_dtype),
            grid_spec=pltpu.PrefetchScalarGridSpec(
                num_scalar_prefetch=0, grid=grid,
                in_specs=[
                    pl.BlockSpec((tm, K), lambda i, j: (i, 0)),
                    pl.BlockSpec((K, tn), lambda i, j: (0, j)),
                    pl.BlockSpec((1, tn), lambda i, j: (0, j)),
                ],
                out_specs=pl.BlockSpec((tm, tn), lambda i, j: (i, j))),
            compiler_params=pltpu.CompilerParams(
                dimension_semantics=("parallel", "parallel"),
                vmem_limit_bytes=VMEM_LIMIT),
        )(x, w, b)

    tk = _tile(K, 512, (256, 128))
    grid = (M // tm, N // tn, K // tk)
    return pl.pallas_call(
        linear_acc_kernel,
        out_shape=jax.ShapeDtypeStruct((M, N), out_dtype),
        grid_spec=pltpu.PrefetchScalarGridSpec(
            num_scalar_prefetch=0, grid=grid,
            in_specs=[
                pl.BlockSpec((tm, tk), lambda i, j, k: (i, k)),
                pl.BlockSpec((tk, tn), lambda i, j, k: (k, j)),
                pl.BlockSpec((1, tn), lambda i, j, k: (0, j)),
            ],
            out_specs=pl.BlockSpec((tm, tn), lambda i, j, k: (i, j)),
            scratch_shapes=[pltpu.VMEM((tm, tn), jnp.float32)]),
        compiler_params=pltpu.CompilerParams(
            dimension_semantics=("parallel", "parallel", "arbitrary"),
            vmem_limit_bytes=VMEM_LIMIT),
    )(x, w, b)


def pallas_linear_res_ln(x, w, b, residual, gamma, beta):
    M, K = x.shape
    N = w.shape[1]                    # = embed_dim, kept full (lane-dense) for the LN
    tm = _tile_m(M)
    grid = (M // tm,)
    return pl.pallas_call(
        partial(linear_res_ln_kernel, eps=LN_EPS),
        out_shape=(jax.ShapeDtypeStruct((M, N), jnp.float32),
                   jax.ShapeDtypeStruct((M, N), jnp.bfloat16)),
        grid_spec=pltpu.PrefetchScalarGridSpec(
            num_scalar_prefetch=0, grid=grid,
            in_specs=[
                pl.BlockSpec((tm, K), lambda i: (i, 0)),   # x (bf16)
                pl.BlockSpec((K, N), lambda i: (0, 0)),    # w (bf16)
                pl.BlockSpec((1, N), lambda i: (0, 0)),    # bias
                pl.BlockSpec((tm, N), lambda i: (i, 0)),   # residual (f32)
                pl.BlockSpec((1, N), lambda i: (0, 0)),    # gamma
                pl.BlockSpec((1, N), lambda i: (0, 0)),    # beta
            ],
            out_specs=(pl.BlockSpec((tm, N), lambda i: (i, 0)),
                       pl.BlockSpec((tm, N), lambda i: (i, 0)))),
        compiler_params=pltpu.CompilerParams(
            dimension_semantics=("parallel",),
            vmem_limit_bytes=VMEM_LIMIT),
    )(x, w, b, residual, gamma, beta)


def pallas_ffn_res_ln(x, w1, b1, w2, b2, residual, gamma, beta):
    M, E = x.shape
    F = w1.shape[1]
    tm = _tile_m(M)
    tf = _tile(F, 1024, (256, 128))
    grid = (M // tm, F // tf)
    return pl.pallas_call(
        partial(ffn_res_ln_kernel, eps=LN_EPS),
        out_shape=(jax.ShapeDtypeStruct((M, E), jnp.float32),
                   jax.ShapeDtypeStruct((M, E), jnp.bfloat16)),
        grid_spec=pltpu.PrefetchScalarGridSpec(
            num_scalar_prefetch=0, grid=grid,
            in_specs=[
                pl.BlockSpec((tm, E), lambda i, f: (i, 0)),    # x (bf16)
                pl.BlockSpec((E, tf), lambda i, f: (0, f)),    # w1
                pl.BlockSpec((1, tf), lambda i, f: (0, f)),    # b1
                pl.BlockSpec((tf, E), lambda i, f: (f, 0)),    # w2
                pl.BlockSpec((1, E), lambda i, f: (0, 0)),     # b2
                pl.BlockSpec((tm, E), lambda i, f: (i, 0)),    # residual (f32)
                pl.BlockSpec((1, E), lambda i, f: (0, 0)),     # gamma
                pl.BlockSpec((1, E), lambda i, f: (0, 0)),     # beta
            ],
            out_specs=(pl.BlockSpec((tm, E), lambda i, f: (i, 0)),
                       pl.BlockSpec((tm, E), lambda i, f: (i, 0))),
            scratch_shapes=[pltpu.VMEM((tm, E), jnp.float32)]),
        compiler_params=pltpu.CompilerParams(
            dimension_semantics=("parallel", "arbitrary"),
            vmem_limit_bytes=VMEM_LIMIT),
    )(x, w1, b1, w2, b2, residual, gamma, beta)


def pallas_flash_attention(qkv, add_mask, *, num_heads, head_dim, scale):
    """qkv: (B, S, 3E) bf16 rows straight from the QKV GEMM; add_mask: (B, 1, S)."""
    B, S, threeE = qkv.shape
    H, Dh = num_heads, head_dim
    E = H * Dh
    tq = _tile(S, 128, (16, 8))
    tk = _tile(S, 256, (256, 128))
    grid = (B, S // tq, S // tk)
    return pl.pallas_call(
        partial(flash_attn_kernel, H=H, Dh=Dh, scale=scale),
        out_shape=jax.ShapeDtypeStruct((B, S, E), jnp.bfloat16),
        grid_spec=pltpu.PrefetchScalarGridSpec(
            num_scalar_prefetch=0, grid=grid,
            in_specs=[
                pl.BlockSpec((1, tq, threeE), lambda b, qi, ki: (b, qi, 0)),  # Q rows
                pl.BlockSpec((1, tk, threeE), lambda b, qi, ki: (b, ki, 0)),  # K/V rows
                pl.BlockSpec((1, 1, tk), lambda b, qi, ki: (b, 0, ki)),       # mask
            ],
            out_specs=pl.BlockSpec((1, tq, E), lambda b, qi, ki: (b, qi, 0)),
            scratch_shapes=[pltpu.VMEM((H, tq, 1), jnp.float32),
                            pltpu.VMEM((H, tq, 1), jnp.float32),
                            pltpu.VMEM((H, tq, Dh), jnp.float32)]),
        compiler_params=pltpu.CompilerParams(
            dimension_semantics=("parallel", "parallel", "arbitrary"),
            vmem_limit_bytes=VMEM_LIMIT),
    )(qkv, qkv, add_mask)


def pallas_attention_with_probs(qkv, add_mask, *, num_heads, head_dim, scale):
    B, S, threeE = qkv.shape
    H, Dh = num_heads, head_dim
    E = H * Dh
    tq = _tile(S, 128, (16, 8))
    grid = (B, S // tq)
    return pl.pallas_call(
        partial(attn_probs_kernel, H=H, Dh=Dh, scale=scale),
        out_shape=(jax.ShapeDtypeStruct((B, S, E), jnp.bfloat16),
                   jax.ShapeDtypeStruct((B, H, S, S), jnp.float32)),
        grid_spec=pltpu.PrefetchScalarGridSpec(
            num_scalar_prefetch=0, grid=grid,
            in_specs=[
                pl.BlockSpec((1, tq, threeE), lambda b, qi: (b, qi, 0)),
                pl.BlockSpec((1, S, threeE), lambda b, qi: (b, 0, 0)),
                pl.BlockSpec((1, 1, S), lambda b, qi: (b, 0, 0)),
            ],
            out_specs=(pl.BlockSpec((1, tq, E), lambda b, qi: (b, qi, 0)),
                       pl.BlockSpec((1, H, tq, S), lambda b, qi: (b, 0, qi, 0)))),
        compiler_params=pltpu.CompilerParams(
            dimension_semantics=("parallel", "parallel"),
            vmem_limit_bytes=VMEM_LIMIT),
    )(qkv, qkv, add_mask)


# ----------------------------------------------------------------------------
# Model (glue around the Pallas kernels)
# ----------------------------------------------------------------------------

def encoder_block(p, x_f32, x_bf16, add_mask, num_heads, need_probs):
    """Post-LN transformer encoder block.
    x_f32/x_bf16: (B, S, E); add_mask: (B, 1, S) additive."""
    B, S, E = x_f32.shape
    H = num_heads
    Dh = E // H
    M = B * S
    x32_2d = x_f32.reshape(M, E)
    x16_2d = x_bf16.reshape(M, E)

    # fused Q/K/V projection: one (E, 3E) GEMM, full-K block, bf16 out
    qkv = pallas_linear(x16_2d, p['wqkv'], p['bqkv'], out_dtype=jnp.bfloat16)
    qkv = qkv.reshape(B, S, 3 * E)

    scale = 1.0 / math.sqrt(Dh)
    if need_probs:
        ctx, probs = pallas_attention_with_probs(
            qkv, add_mask, num_heads=H, head_dim=Dh, scale=scale)
    else:
        ctx = pallas_flash_attention(
            qkv, add_mask, num_heads=H, head_dim=Dh, scale=scale)
        probs = None
    ctx2d = ctx.reshape(M, E)                 # bf16, lane-dense E layout

    # output projection + residual + LayerNorm 1 (attn_dropout / dropout = identity)
    h1_f32, h1_bf16 = pallas_linear_res_ln(ctx2d, p['wo'], p['bo'], x32_2d,
                                           p['ln1_g'], p['ln1_b'])

    # fused FFN + residual + LayerNorm 2
    h2_f32, h2_bf16 = pallas_ffn_res_ln(h1_bf16, p['w1'], p['b1'], p['w2'], p['b2'],
                                        h1_f32, p['ln2_g'], p['ln2_b'])

    return (h2_f32.reshape(B, S, E), h2_bf16.reshape(B, S, E), probs)


def bert_forward(params, input_ids, key_padding_mask=None, token_type_ids=None,
                 pooling_output=False, apply_tanh=False, output_attention=False):
    cfg = params['cfg']
    B, S = input_ids.shape
    E = cfg['embed_dim']
    H = cfg['num_heads']

    # embeddings (gather = glue)
    x = params['tok_emb'][input_ids] + params['pos_emb'][:S][None, :, :]
    if token_type_ids is not None and 'type_emb' in params:
        x = x + params['type_emb'][token_type_ids]
    x_f32 = x.astype(jnp.float32)
    x_bf16 = x_f32.astype(jnp.bfloat16)

    if key_padding_mask is not None:
        add_mask = jnp.where(key_padding_mask, jnp.float32(-1e9),
                             jnp.float32(0.0))[:, None, :]
    else:
        add_mask = jnp.zeros((B, 1, S), jnp.float32)

    attns = []
    for blk in params['blocks']:
        x_f32, x_bf16, probs = encoder_block(blk, x_f32, x_bf16, add_mask, H,
                                             need_probs=output_attention)
        if output_attention:
            attns.append(probs)

    if apply_tanh:
        clf_in = jnp.tanh(x_f32).astype(jnp.bfloat16)
    else:
        clf_in = x_bf16

    # classifier: Linear(E -> clf_hidden) -> Dropout(identity) -> Linear(clf_hidden -> C)
    x2 = clf_in.reshape(B * S, E)
    h = pallas_linear(x2, params['clf_w1'], params['clf_b1'], out_dtype=jnp.bfloat16)
    out = pallas_linear(h, params['clf_w2'], params['clf_b2'], out_dtype=jnp.float32)
    out = out.reshape(B, S, -1)

    if pooling_output:
        out = out[:, 0]
    if output_attention:
        return out, jnp.stack(attns)          # (L, B, H, S, S)
    return out


# ----------------------------------------------------------------------------
# Deterministic parameter init (xavier-uniform for matrices; weights stored bf16)
# ----------------------------------------------------------------------------

def xavier(key, shape):
    fan_in, fan_out = shape[0], shape[1]
    lim = math.sqrt(6.0 / (fan_in + fan_out))
    return jax.random.uniform(key, shape, jnp.float32, -lim, lim)


def init_params(key, *, num_classes, clf_hidden_dim, vocab_size, num_token_types,
                num_encoder_blocks, embed_dim, num_heads, ff_dim, max_seq_len):
    keys = iter(jax.random.split(key, 8 + 12 * num_encoder_blocks))

    def bf16(w):
        return w.astype(jnp.bfloat16)

    params = {
        'cfg': dict(embed_dim=embed_dim, num_heads=num_heads),
        'tok_emb': xavier(next(keys), (vocab_size, embed_dim)),
        'pos_emb': xavier(next(keys), (max_seq_len, embed_dim)),
    }
    if num_token_types is not None:
        params['type_emb'] = xavier(next(keys), (num_token_types, embed_dim))

    blocks = []
    for _ in range(num_encoder_blocks):
        wq = xavier(next(keys), (embed_dim, embed_dim))
        wk = xavier(next(keys), (embed_dim, embed_dim))
        wv = xavier(next(keys), (embed_dim, embed_dim))
        blk = {
            # fused QKV weight (E, 3E); qkv_bias=False -> zero bias
            'wqkv': bf16(jnp.concatenate([wq, wk, wv], axis=1)),
            'bqkv': jnp.zeros((1, 3 * embed_dim), jnp.float32),
            'wo': bf16(xavier(next(keys), (embed_dim, embed_dim))),
            'bo': jnp.zeros((1, embed_dim), jnp.float32),
            'w1': bf16(xavier(next(keys), (embed_dim, ff_dim))),
            'b1': jnp.zeros((1, ff_dim), jnp.float32),
            'w2': bf16(xavier(next(keys), (ff_dim, embed_dim))),
            'b2': jnp.zeros((1, embed_dim), jnp.float32),
            'ln1_g': jnp.ones((1, embed_dim), jnp.float32),
            'ln1_b': jnp.zeros((1, embed_dim), jnp.float32),
            'ln2_g': jnp.ones((1, embed_dim), jnp.float32),
            'ln2_b': jnp.zeros((1, embed_dim), jnp.float32),
        }
        blocks.append(blk)
    params['blocks'] = blocks

    params['clf_w1'] = bf16(xavier(next(keys), (embed_dim, clf_hidden_dim)))
    params['clf_b1'] = jnp.zeros((1, clf_hidden_dim), jnp.float32)
    params['clf_w2'] = bf16(xavier(next(keys), (clf_hidden_dim, num_classes)))
    params['clf_b2'] = jnp.zeros((1, num_classes), jnp.float32)
    return params


# ----------------------------------------------------------------------------
# Demo
# ----------------------------------------------------------------------------

if __name__ == "__main__":
    B, S = 2, 8
    vocab_size = 100
    embed_dim, num_heads, ff_dim = 32, 4, 64
    num_encoder_blocks = 2
    num_classes, clf_hidden_dim = 3, 16

    key = jax.random.PRNGKey(0)
    k_param, k_ids, k_types = jax.random.split(key, 3)

    params = init_params(
        k_param,
        num_classes=num_classes, clf_hidden_dim=clf_hidden_dim,
        vocab_size=vocab_size, num_token_types=2,
        num_encoder_blocks=num_encoder_blocks, embed_dim=embed_dim,
        num_heads=num_heads, ff_dim=ff_dim, max_seq_len=S,
    )

    input_ids = jax.random.randint(k_ids, (B, S), 0, vocab_size, dtype=jnp.int32)
    token_type_ids = jax.random.randint(k_types, (B, S), 0, 2, dtype=jnp.int32)
    # last two positions of sequence 1 are padding (True = pad)
    key_padding_mask = jnp.zeros((B, S), jnp.bool_).at[1, -2:].set(True)

    # path 1: attention probs requested (uses the probs-emitting kernel)
    logits, attn = bert_forward(params, input_ids,
                                key_padding_mask=key_padding_mask,
                                token_type_ids=token_type_ids,
                                output_attention=True)
    jax.block_until_ready((logits, attn))

    # path 2: no attention probs (flash-style kernel) + pooling + tanh
    pooled = bert_forward(params, input_ids,
                          key_padding_mask=key_padding_mask,
                          token_type_ids=token_type_ids,
                          pooling_output=True, apply_tanh=True,
                          output_attention=False)
    jax.block_until_ready(pooled)

    assert logits.shape == (B, S, num_classes)
    assert attn.shape == (num_encoder_blocks, B, num_heads, S, S)
    assert pooled.shape == (B, num_classes)
    assert bool(jnp.all(jnp.isfinite(logits)))
    assert bool(jnp.all(jnp.isfinite(pooled)))
    print("KERNEL_OK")
</pallas_src>

<mosaic_0001>
module attributes {stable_mosaic.version = 11 : i64} {
  func.func @linear_kernel(%arg0: i32, %arg1: i32, %arg2: memref<8x32xbf16, #tpu.memory_space<vmem>>, %arg3: memref<32x96xbf16, #tpu.memory_space<vmem>>, %arg4: memref<1x96xf32, #tpu.memory_space<vmem>>, %arg5: memref<8x96xbf16, #tpu.memory_space<vmem>>) attributes {dimension_semantics = [#tpu.dimension_semantics<parallel>, #tpu.dimension_semantics<parallel>], iteration_bounds = array<i64: 2, 1>, scalar_prefetch = 0 : i64, scratch_operands = 0 : i64, tpu.core_type = #tpu.core_type<tc>, window_params = [{transform_indices = @transform_0, window_bounds = array<i64: 8, 32>}, {transform_indices = @transform_1, window_bounds = array<i64: 32, 96>}, {transform_indices = @transform_2, window_bounds = array<i64: 1, 96>}, {transform_indices = @transform_3, window_bounds = array<i64: 8, 96>}]} {
    %c0 = arith.constant 0 : index
    %c0_0 = arith.constant 0 : index
    %0 = vector.load %arg2[%c0, %c0_0] : memref<8x32xbf16, #tpu.memory_space<vmem>>, vector<8x32xbf16>
    %c0_1 = arith.constant 0 : index
    %c0_2 = arith.constant 0 : index
    %1 = vector.load %arg3[%c0_1, %c0_2] : memref<32x96xbf16, #tpu.memory_space<vmem>>, vector<32x96xbf16>
    %cst = arith.constant dense<0.000000e+00> : vector<8x96xf32>
    %2 = tpu.matmul %0, %1, %cst {dimension_numbers = #tpu.dot_dimension_numbers<[1], [0], [0], [1], [0, 0, 1, 1], [], []>} : vector<8x32xbf16>, vector<32x96xbf16>, vector<8x96xf32> -> vector<8x96xf32>
    %c0_3 = arith.constant 0 : index
    %c0_4 = arith.constant 0 : index
    %3 = vector.load %arg4[%c0_3, %c0_4] : memref<1x96xf32, #tpu.memory_space<vmem>>, vector<1x96xf32>
    %4 = vector.broadcast %3 : vector<1x96xf32> to vector<8x96xf32>
    %5 = arith.addf %2, %4 : vector<8x96xf32>
    %6 = arith.truncf %5 : vector<8x96xf32> to vector<8x96xbf16>
    %c0_5 = arith.constant 0 : index
    %c0_6 = arith.constant 0 : index
    %7 = vector.load %arg5[%c0_5, %c0_6] : memref<8x96xbf16, #tpu.memory_space<vmem>>, vector<8x96xbf16>
    tpu.vector_store %arg5[%c0_5, %c0_6], %6 {strides = array<i32>} : memref<8x96xbf16, #tpu.memory_space<vmem>>, vector<8x96xbf16>,
    return
  }
  func.func @transform_0(%arg0: i32, %arg1: i32) -> (i32, i32) {
    %c0_i32 = arith.constant 0 : i32
    %c0_i32_0 = arith.constant 0 : i32
    return %arg0, %c0_i32 : i32, i32
  }
  func.func @transform_1(%arg0: i32, %arg1: i32) -> (i32, i32) {
    %c0_i32 = arith.constant 0 : i32
    %c0_i32_0 = arith.constant 0 : i32
    return %c0_i32, %arg1 : i32, i32
  }
  func.func @transform_2(%arg0: i32, %arg1: i32) -> (i32, i32) {
    %c0_i32 = arith.constant 0 : i32
    %c0_i32_0 = arith.constant 0 : i32
    return %c0_i32, %arg1 : i32, i32
  }
  func.func @transform_3(%arg0: i32, %arg1: i32) -> (i32, i32) {
    %c0_i32 = arith.constant 0 : i32
    return %arg0, %arg1 : i32, i32
  }
}

</mosaic_0001>

<llo_original>
// kernel: tpu_custom_call.1
$region0: #{tpu_custom_call.1}
  #allocation0 [shape = 'u32[]', space=smem, size = 0x4, offset = 0x4, fixed_abs, tag = 'smem constant byte address 0x4 - core index']
  #allocation1 [shape = 'u32[144,128]{1,0:T(1,128)}', space=vmem, size = 0x12000, scoped, tag = 'internal scratch']
  %s0 = inlined_call_operand.hbm [shape: bf16[16,32], index: 0, kind: input, shape index: {}]
  %s1 = inlined_call_operand.hbm [shape: bf16[32,96], index: 1, kind: input, shape index: {}]
  %s2 = inlined_call_operand.vmem [shape: f32[1,96], index: 2, kind: input, shape index: {}]
  %s3 = inlined_call_operand.hbm [shape: bf16[16,96], index: 3, kind: output, shape index: {}]
  %s4 = sld [smem:[#allocation0]]
  $region53: #{tpu_custom_call.1} parent=0
    _
  %s6 = ssub.s32 1, %s4
  %s7 = scalar_select 0, %s6, %s4
  $region1: #{tpu_custom_call.1} parent=0
    #allocation2 [shape = 'u8[4096]{0}', space=vmem, size = 0x1000, scoped, tag = 'input window, operand 0']
    #allocation3 [shape = 's32[2]{0}', space=sflag, size = 0x8, scoped, tag = 'scoped memory for tpu_custom_call.1']
    #allocation4 [shape = 's32[2]{0}', space=sflag, size = 0x8, scoped, tag = 'scoped memory for tpu_custom_call.1']
    #allocation5 [shape = 'u8[8192]{0}', space=vmem, size = 0x2000, scoped, tag = 'input window, operand 1, single buffered']
    #allocation6 [shape = 's32[1]{0}', space=sflag, size = 0x4, scoped, tag = 'scoped memory for tpu_custom_call.1']
    #allocation7 [shape = 'u8[4096]{0}', space=vmem, size = 0x1000, scoped, tag = 'output window, operand 0']
    %8 = vsyncpa [#allocation3], 0
    %s9 = scalar_lea.sflag [#allocation3], 1
    %10 = vsyncpa %s9, 0
    %11 = vsyncpa [#allocation6], 0
    %12 = vsyncpa [#allocation4], 0
    %s13 = scalar_lea.sflag [#allocation4], 1
    %14 = vsyncpa %s13, 0
    loop: start=0, step=1, limit=4
    $region2: #{tpu_custom_call.1} parent=1 // loop_pre_header
      _
    $region3: #{tpu_custom_call.1} parent=1 // loop_header
      %s16 = sphi 0, %s20
      %p17 = scmp.ge.s32.totalorder %s16, 4
      %s23 = sphi 0, %s35
      %s24 = sphi 0, %s31
      %s25 = sphi 0, %s23
      %s26 = sphi 0, %s24
      %s27 = sphi 0, %s25
      %s28 = sphi 0, %s26
      %s38 = sphi 0, %s40
      %s41 = sphi 0, %s38
      %s42 = sphi 0, %s41
      %s58 = sphi 0, %s42
      %s64 = sphi 0, %s66
      %s67 = sphi 0, %s64
      %s68 = sphi 0, %s67
      %s84 = sphi 0, %s68
      %s90 = sphi 0, %s92
      %s93 = sphi 0, %s90
      %s94 = sphi 0, %s93
      %s110 = sphi 0, %s94
      %s118 = sphi 0, %s120
      %s121 = sphi 0, %s118
      %s122 = sphi 0, %s121
      %s138 = sphi 0, %s122
    $region4: #{tpu_custom_call.1} parent=1 // loop_header_branch
      %19 = sbr.rel (%p17) target = $region8
    $region5: #{tpu_custom_call.1} parent=1 // loop_body
      %s21 = ssub.s32 %s16, 1
      %s22 = ssub.s32 %s16, 2
      %s29 = sadd.s32 1, %s24
      %p30 = scmp.ge.s32.totalorder %s29, 1
      %s31 = scalar_select %p30, 0, %s29
      %s32 = sadd.s32 1, %s23
      %s33 = scalar_select %p30, %s32, %s23
      %p34 = scmp.ge.s32.totalorder %s33, 2
      %s35 = scalar_select %p34, 0, %s33
      %s36 = ssub.s32 %s23, %s35
      %p37 = scmp.eq.s32.totalorder %s36, 0
      %s39 = sadd.s32 %s38, 1
      %s40 = scalar_select %p37, %s38, %s39
      %p43 = pneg %p37
      %p44 = scmp.eq.s32.totalorder %s16, 1
      %p45 = por %p43, %p44
      %p46 = scmp.ne.s32.totalorder %s38, %s41
      %p47 = scmp.eq.s32.totalorder %s16, 0
      %p48 = por %p46, %p47
      %p49 = scmp.ne.s32.totalorder %s38, %s41
      %p50 = scmp.eq.s32.totalorder %s21, 1
      %p51 = por %p49, %p50
      %p52 = scmp.ne.s32.totalorder %s41, %s42
      %p53 = scmp.eq.s32.totalorder %s21, 0
      %p54 = por %p52, %p53
      %p55 = scmp.ne.s32.totalorder %s41, %s42
      %p56 = scmp.eq.s32.totalorder %s22, 1
      %p57 = por %p55, %p56
      %p59 = scmp.ne.s32.totalorder %s42, %s58
      %p60 = scmp.eq.s32.totalorder %s22, 0
      %p61 = por %p59, %p60
      %s62 = ssub.s32 %s24, %s31
      %p63 = scmp.eq.s32.totalorder %s62, 0
      %s65 = sadd.s32 %s64, 1
      %s66 = scalar_select %p63, %s64, %s65
      %p69 = pneg %p63
      %p70 = scmp.eq.s32.totalorder %s16, 1
      %p71 = por %p69, %p70
      %p72 = scmp.ne.s32.totalorder %s64, %s67
      %p73 = scmp.eq.s32.totalorder %s16, 0
      %p74 = por %p72, %p73
      %p75 = scmp.ne.s32.totalorder %s64, %s67
      %p76 = scmp.eq.s32.totalorder %s21, 1
      %p77 = por %p75, %p76
      %p78 = scmp.ne.s32.totalorder %s67, %s68
      %p79 = scmp.eq.s32.totalorder %s21, 0
      %p80 = por %p78, %p79
      %p81 = scmp.ne.s32.totalorder %s67, %s68
      %p82 = scmp.eq.s32.totalorder %s22, 1
      %p83 = por %p81, %p82
      %p85 = scmp.ne.s32.totalorder %s68, %s84
      %p86 = scmp.eq.s32.totalorder %s22, 0
      %p87 = por %p85, %p86
      %s88 = ssub.s32 %s24, %s31
      %p89 = scmp.eq.s32.totalorder %s88, 0
      %s91 = sadd.s32 %s90, 1
      %s92 = scalar_select %p89, %s90, %s91
      %p95 = pneg %p89
      %p96 = scmp.eq.s32.totalorder %s16, 1
      %p97 = por %p95, %p96
      %p98 = scmp.ne.s32.totalorder %s90, %s93
      %p99 = scmp.eq.s32.totalorder %s16, 0
      %p100 = por %p98, %p99
      %p101 = scmp.ne.s32.totalorder %s90, %s93
      %p102 = scmp.eq.s32.totalorder %s21, 1
      %p103 = por %p101, %p102
      %p104 = scmp.ne.s32.totalorder %s93, %s94
      %p105 = scmp.eq.s32.totalorder %s21, 0
      %p106 = por %p104, %p105
      %p107 = scmp.ne.s32.totalorder %s93, %s94
      %p108 = scmp.eq.s32.totalorder %s22, 1
      %p109 = por %p107, %p108
      %p111 = scmp.ne.s32.totalorder %s94, %s110
      %p112 = scmp.eq.s32.totalorder %s22, 0
      %p113 = por %p111, %p112
      %s114 = ssub.s32 %s23, %s35
      %s115 = ssub.s32 %s24, %s31
      %s116 = sor.u32 %s114, %s115
      %p117 = scmp.eq.s32.totalorder %s116, 0
      %s119 = sadd.s32 %s118, 1
      %s120 = scalar_select %p117, %s118, %s119
      %p123 = pneg %p117
      %p124 = scmp.eq.s32.totalorder %s16, 1
      %p125 = por %p123, %p124
      %p126 = scmp.ne.s32.totalorder %s118, %s121
      %p127 = scmp.eq.s32.totalorder %s16, 0
      %p128 = por %p126, %p127
      %p129 = scmp.ne.s32.totalorder %s118, %s121
      %p130 = scmp.eq.s32.totalorder %s21, 1
      %p131 = por %p129, %p130
      %p132 = scmp.ne.s32.totalorder %s121, %s122
      %p133 = scmp.eq.s32.totalorder %s21, 0
      %p134 = por %p132, %p133
      %p135 = scmp.ne.s32.totalorder %s121, %s122
      %p136 = scmp.eq.s32.totalorder %s22, 1
      %p137 = por %p135, %p136
      %p139 = scmp.ne.s32.totalorder %s122, %s138
      %p140 = scmp.eq.s32.totalorder %s22, 0
      %p141 = por %p139, %p140
      %p142 = scmp.le.s32.totalorder 1, %s16
      %p143 = scmp.lt.s32.totalorder %s16, 3
      %p144 = pnand %p142, %p143
      %p145 = pneg %p144
      // Predicated region
      $region9: #{tpu_custom_call.1} parent=5 // pred_check
        _
      $region10: #{tpu_custom_call.1} parent=5 // pred_check_branch
        %147 = sbr.rel (%p144) target = $region12
      $region11: #{tpu_custom_call.1} parent=5 // pred_region
        %s148 = ssub.s32 %s16, 1
        // Predicated region
        $region13: #{tpu_custom_call.1} parent=11 // pred_check
          %p149 = pneg %p80
        $region14: #{tpu_custom_call.1} parent=11 // pred_check_branch
          %151 = sbr.rel (%p149) target = $region16
        $region15: #{tpu_custom_call.1} parent=11 // pred_region
          %s153 = ssub.s32 256, 256
          %154 = vsyncadd [#allocation6], %s153
          %s155 = smul.addr %s26, 64
          %s156 = scalar_lea.hbm %s1, %s155
          %s157 = sshll.u32 [#allocation5], 4
          %s158 = int_to_ptr.vmem [resolvable:$true] %s157
          %163 = dma.hbm_to_vmem [thread:$0]  %s156, 256, %s158, [#allocation6], 64, 64, 4
        $region16: #{tpu_custom_call.1} parent=11 // pred_fallthru
          _
        // Predicated region
        $region17: #{tpu_custom_call.1} parent=11 // pred_check
          %p164 = pneg %p106
        $region18: #{tpu_custom_call.1} parent=11 // pred_check_branch
          %166 = sbr.rel (%p164) target = $region20
        $region19: #{tpu_custom_call.1} parent=11 // pred_region
          %p167 = scmp.lt.s32.totalorder %s26, 0
          %s168 = scalar_select %p167, %s26, 0
          %s169 = scalar_lea.vmem %s2, %s168
        $region20: #{tpu_custom_call.1} parent=11 // pred_fallthru
          _
      $region12: #{tpu_custom_call.1} parent=5 // pred_fallthru
        _
      %p170 = scmp.lt.s32.totalorder %s16, 2
      // Predicated region
      $region21: #{tpu_custom_call.1} parent=5 // pred_check
        %p171 = pneg %p170
      $region22: #{tpu_custom_call.1} parent=5 // pred_check_branch
        %173 = sbr.rel (%p171) target = $region24
      $region23: #{tpu_custom_call.1} parent=5 // pred_region
        // Predicated region
        $region25: #{tpu_custom_call.1} parent=23 // pred_check
          %p174 = pneg %p48
        $region26: #{tpu_custom_call.1} parent=23 // pred_check_branch
          %176 = sbr.rel (%p174) target = $region28
        $region27: #{tpu_custom_call.1} parent=23 // pred_region
          %s177 = sand.u32 %s38, 1
          %s178 = scalar_lea.sflag [#allocation3], %s177
          %s179 = sand.u32 %s38, 1
          %s180 = smul.addr %s179, 4
          %s181 = scalar_lea.vmem [#allocation2], %s180
          %s183 = ssub.s32 64, 64
          %184 = vsyncadd %s178, %s183
          %s185 = smul.addr %s23, 64
          %s186 = scalar_lea.hbm %s0, %s185
          %s188 = sshll.u32 %s181, 4
          %s189 = int_to_ptr.vmem [resolvable:$true] %s188
          %191 = dma.hbm_to_vmem [thread:$0]  %s186, 64, %s189, %s178
        $region28: #{tpu_custom_call.1} parent=23 // pred_fallthru
          _
      $region24: #{tpu_custom_call.1} parent=5 // pred_fallthru
        _
      %p192 = scmp.le.s32.totalorder 1, %s16
      %p193 = scmp.lt.s32.totalorder %s16, 3
      %p194 = pnand %p192, %p193
      %p195 = pneg %p194
      // Predicated region
      $region29: #{tpu_custom_call.1} parent=5 // pred_check
        _
      $region30: #{tpu_custom_call.1} parent=5 // pred_check_branch
        %197 = sbr.rel (%p194) target = $region32
      $region31: #{tpu_custom_call.1} parent=5 // pred_region
        %s198 = ssub.s32 %s16, 1
        %s199 = sand.u32 %s41, 1
        %s200 = scalar_lea.sflag [#allocation3], %s199
        %s201 = sand.u32 %s41, 1
        %s202 = smul.addr %s201, 4
        %s203 = scalar_lea.vmem [#allocation2], %s202
        // Predicated region
        $region33: #{tpu_custom_call.1} parent=31 // pred_check
          %p204 = pneg %p54
        $region34: #{tpu_custom_call.1} parent=31 // pred_check_branch
          %206 = sbr.rel (%p204) target = $region36
        $region35: #{tpu_custom_call.1} parent=31 // pred_region
          %207 = dma.done %s200, 64
        $region36: #{tpu_custom_call.1} parent=31 // pred_fallthru
          _
        // Predicated region
        $region37: #{tpu_custom_call.1} parent=31 // pred_check
          %p208 = pneg %p80
        $region38: #{tpu_custom_call.1} parent=31 // pred_check_branch
          %210 = sbr.rel (%p208) target = $region40
        $region39: #{tpu_custom_call.1} parent=31 // pred_region
          %211 = dma.done [#allocation6], 256
        $region40: #{tpu_custom_call.1} parent=31 // pred_fallthru
          _
        %s212 = sand.u32 %s41, 1
        %s213 = scalar_lea.sflag [#allocation3], %s212
        %s214 = sand.u32 %s41, 1
        %s215 = smul.addr %s214, 4
        %s216 = scalar_lea.vmem [#allocation2], %s215
        %p217 = pneg %p54
        %p218 = pneg %p51
        %p219 = pneg %p80
        %p220 = pneg %p77
        %p221 = scmp.lt.s32.totalorder %s26, 0
        %s222 = scalar_select %p221, %s26, 0
        %s223 = scalar_lea.vmem %s2, %s222
        %p224 = pneg %p106
        %p225 = pneg %p103
        %p226 = pneg %p134
        %p227 = pneg %p131
        %s228 = sand.u32 %s121, 1
        %s229 = scalar_lea.sflag [#allocation4], %s228
        %s230 = sand.u32 %s121, 1
        %s231 = smul.addr %s230, 4
        %s232 = scalar_lea.vmem [#allocation7], %s231
        %p233 = scmp.lt.s32.totalorder %s26, 0
        %s234 = scalar_select %p233, %s26, 0
        %s235 = scalar_lea.vmem %s2, %s234
        %v237 = vld [vmem:[%s203] sm:$0xf]
        %v238 = vld [vmem:[#allocation5] sm:$0xf]
        %v239 = vld [vmem:[#allocation5 + $0x4] sm:$0xf]
        %v240 = vld [vmem:[#allocation5 + $0x8] sm:$0xf]
        %v241 = vld [vmem:[#allocation5 + $0xc] sm:$0xf]
        %v242 = vld [vmem:[%s235] sm:$0x1]
        %v244 = vlaneseq
        %v245 = vshrl.u32 %v244, 7
        %v246 = vsub.s32 0, %v245
        %v247 = vrot.slane %v242, %v246
        %v253 = vunpack.c.l.b16 %v238
        %v254 = vunpack.c.l.b16 %v239
        %v255 = vunpack.c.l.b16 %v240
        %v256 = vunpack.c.l.b16 %v241
        %v257 = vpack.c.b16 %v254, %v253
        %v258 = vpack.c.b16 %v256, %v255
        %vm261 = vcmask 261120
        %v263 = vsel %vm261, %v237, 0
        %265 = vmatprep.subr.bf16.mxu0 0
        %266 = vmatpush1.bf16.msra.mxu0 %v257
        %267 = vmatprep.subr.bf16.mxu0 0
        %268 = vmatpush1.bf16.msra.mxu0 %v258
        %269 = vmatprep.subr.bf16.mxu0 0
        %270 = vmatpush1.bf16.msra.mxu0 0
        %271 = vmatprep.subr.bf16.mxu0 0
        %272 = vmatpush1.bf16.msra.mxu0 0
        %273 = vmatprep.subr.bf16.mxu0 0
        %274 = vmatpush1.bf16.msra.mxu0 0
        %275 = vmatprep.subr.bf16.mxu0 0
        %276 = vmatpush1.bf16.msra.mxu0 0
        %277 = vmatprep.subr.bf16.mxu0 0
        %278 = vmatpush1.bf16.msra.mxu0 0
        %279 = vmatprep.subr.bf16.mxu0 0
        %280 = vmatpush1.bf16.msra.mxu0 0
        %281 = vmatprep.subr.bf16.mxu0 0
        %282 = vmatpush1.bf16.msra.mxu0 0
        %283 = vmatprep.subr.bf16.mxu0 0
        %284 = vmatpush1.bf16.msra.mxu0 0
        %285 = vmatprep.subr.bf16.mxu0 0
        %286 = vmatpush1.bf16.msra.mxu0 0
        %287 = vmatprep.subr.bf16.mxu0 0
        %288 = vmatpush1.bf16.msra.mxu0 0
        %289 = vmatprep.subr.bf16.mxu0 0
        %290 = vmatpush1.bf16.msra.mxu0 0
        %291 = vmatprep.subr.bf16.mxu0 0
        %292 = vmatpush1.bf16.msra.mxu0 0
        %293 = vmatprep.subr.bf16.mxu0 0
        %294 = vmatpush1.bf16.msra.mxu0 0
        %295 = vmatprep.subr.bf16.mxu0 0
        %296 = vmatpush1.bf16.msra.mxu0 0
        %297 = vmatprep.mubr.bf16.mxu0 0
        %298 = vmatmul.mubr.bf16.gmra.mrb[0].mxu0 %v263
        %v299 = vpop.f32.mrb[0].mxu0
        %v300 = vadd.f32 %v247, %v299
        %v301 = vpop.f32.mrb[0].mxu0
        %v302 = vpop.f32.mrb[0].mxu0
        %v303 = vpop.f32.mrb[0].mxu0
        %304 = vdwg.mxu0
        %v305 = vpack.c.bf16 %v300, %v300
        %vm306 = vcmask 781312
        %307 = vst.msk [vmem:[%s232] sm:$0xf] %vm306, %v305
        %s308 = sand.u32 %s121, 1
        %s309 = scalar_lea.sflag [#allocation4], %s308
        %s310 = sand.u32 %s121, 1
        %s311 = smul.addr %s310, 4
        %s312 = scalar_lea.vmem [#allocation7], %s311
        // Predicated region
        $region41: #{tpu_custom_call.1} parent=31 // pred_check
          %p313 = pneg %p131
        $region42: #{tpu_custom_call.1} parent=31 // pred_check_branch
          %315 = sbr.rel (%p313) target = $region44
        $region43: #{tpu_custom_call.1} parent=31 // pred_region
          %s317 = ssub.s32 64, 64
          %318 = vsyncadd %s309, %s317
          %s319 = sadd.s32 %s26, %s25
          %s320 = smul.addr %s319, 64
          %s321 = scalar_lea.hbm %s3, %s320
          %s323 = sshll.u32 %s312, 4
          %s324 = int_to_ptr.vmem [resolvable:$true] %s323
          %326 = dma.vmem_to_hbm [thread:$0]  %s324, 64, %s321, %s309
        $region44: #{tpu_custom_call.1} parent=31 // pred_fallthru
          _
      $region32: #{tpu_custom_call.1} parent=5 // pred_fallthru
        _
      %p327 = scmp.le.s32.totalorder 2, %s16
      // Predicated region
      $region45: #{tpu_custom_call.1} parent=5 // pred_check
        %p328 = pneg %p327
      $region46: #{tpu_custom_call.1} parent=5 // pred_check_branch
        %330 = sbr.rel (%p328) target = $region48
      $region47: #{tpu_custom_call.1} parent=5 // pred_region
        %s331 = ssub.s32 %s16, 2
        // Predicated region
        $region49: #{tpu_custom_call.1} parent=47 // pred_check
          %p332 = pneg %p137
        $region50: #{tpu_custom_call.1} parent=47 // pred_check_branch
          %334 = sbr.rel (%p332) target = $region52
        $region51: #{tpu_custom_call.1} parent=47 // pred_region
          %s335 = sand.u32 %s122, 1
          %s336 = scalar_lea.sflag [#allocation4], %s335
          %s337 = sand.u32 %s122, 1
          %s338 = smul.addr %s337, 4
          %s339 = scalar_lea.vmem [#allocation7], %s338
          %340 = dma.done %s336, 64
        $region52: #{tpu_custom_call.1} parent=47 // pred_fallthru
          _
      $region48: #{tpu_custom_call.1} parent=5 // pred_fallthru
        _
    $region6: #{tpu_custom_call.1} parent=1 // loop_footer
      %s20 = sadd.s32 1, %s16
    $region7: #{tpu_custom_call.1} parent=1 // loop_footer_branch
      %15 = sbr.rel target = $region3
    $region8: #{tpu_custom_call.1} parent=1 // loop_exit
      _
    %341 = vsyncpa [#allocation3], 1
    %s342 = scalar_lea.sflag [#allocation3], 1
    %343 = vsyncpa %s342, 1
    %344 = vsyncpa [#allocation6], 1
    %345 = vsyncpa [#allocation4], 1
    %s346 = scalar_lea.sflag [#allocation4], 1
    %347 = vsyncpa %s346, 1

</llo_original>
